<compile_context>
chip_gen: v7x
topology: tpu7x:2x2x1
jax: 0.10.0
libtpu: 0.0.40
codegen_flags: <defaults>
</compile_context>

<pallas_src>
import functools

import jax
import jax.numpy as jnp
from jax.experimental import pallas as pl
from jax.experimental.pallas import tpu as pltpu


def _round_up(x, m):
    return ((x + m - 1) // m) * m


# ----------------------------------------------------------------------------
# Pallas kernel: both dense layers + activation + residual, fused in VMEM.
# ----------------------------------------------------------------------------
def _residual_kernel(x_ref, w1_ref, b1_ref, w2_ref, b2_ref, o_ref, *,
                     use_act, compute_dtype):
    x = x_ref[...]                                            # (tile_n, U_p)

    # dense_1 (MXU, f32 accumulation)
    h = jnp.dot(x, w1_ref[...], preferred_element_type=jnp.float32)
    h = h + b1_ref[...]                                       # bias broadcast (1, U_p)
    if use_act:
        h = h * jax.nn.sigmoid(h)                             # swish / SiLU (EUP)

    # dense_2 (MXU, f32 accumulation)
    h = jnp.dot(h.astype(compute_dtype), w2_ref[...],
                preferred_element_type=jnp.float32)
    h = h + b2_ref[...]
    if use_act:
        h = h * jax.nn.sigmoid(h)

    # residual add in f32, final cast to output dtype
    o_ref[...] = (x.astype(jnp.float32) + h).astype(o_ref.dtype)


# ----------------------------------------------------------------------------
# Wrapper: padding, layout, tiling, pallas_call.
# ----------------------------------------------------------------------------
def residual_layer(x, w1, b1, w2, b2, *, use_act=True, tile_n=256,
                   compute_dtype=jnp.bfloat16):
    """Fused residual MLP block.

    x:      (N, U) activations.
    w1, w2: (U, U) PyTorch nn.Linear weights, layout (out_features, in_features).
    b1, b2: (U,) biases.
    compute_dtype: matmul input dtype (bf16 default, f32 accumulation);
                   None -> use x.dtype.
    """
    N, U = x.shape
    out_dtype = x.dtype
    cdt = jnp.dtype(compute_dtype) if compute_dtype is not None else jnp.dtype(x.dtype)

    # --- lane padding: units dim up to a multiple of 128 (full-lane stores) ---
    U_p = _round_up(U, 128)

    # --- row tile: large and MXU-friendly, clamped to the problem size -------
    sub = 16 if cdt.itemsize < 4 else 8            # sublane granularity
    tile_n = max(sub, _round_up(min(tile_n, _round_up(N, sub)), sub))
    N_p = _round_up(N, tile_n)
    grid_n = N_p // tile_n

    def _pad2(a, rows, cols, dtype):
        a = jnp.asarray(a, dtype)
        return jnp.pad(a, ((0, rows - a.shape[0]), (0, cols - a.shape[1])))

    # PyTorch Linear computes y = x @ W^T + b; pre-transpose so the kernel
    # does plain x @ W on the MXU.  Zero padding keeps padded rows/cols inert.
    x_p = _pad2(x, N_p, U_p, cdt)
    w1_t = _pad2(jnp.asarray(w1).T, U_p, U_p, cdt)
    w2_t = _pad2(jnp.asarray(w2).T, U_p, U_p, cdt)
    b1_p = _pad2(jnp.asarray(b1, jnp.float32).reshape(1, U), 1, U_p, jnp.float32)
    b2_p = _pad2(jnp.asarray(b2, jnp.float32).reshape(1, U), 1, U_p, jnp.float32)

    # --- advisory cost estimate ----------------------------------------------
    flops = 4 * N_p * U_p * U_p + (6 if use_act else 4) * N_p * U_p
    transcendentals = (2 * N_p * U_p) if use_act else 0
    bytes_accessed = (x_p.size * cdt.itemsize
                      + N_p * U_p * jnp.dtype(out_dtype).itemsize
                      + 2 * U_p * U_p * cdt.itemsize
                      + 2 * U_p * 4)

    # --- VMEM budget: double-buffered x/out tiles + resident weights ---------
    dbl = 2
    vmem_needed = (dbl * tile_n * U_p * (cdt.itemsize + jnp.dtype(out_dtype).itemsize)
                   + dbl * 2 * U_p * U_p * cdt.itemsize
                   + dbl * 2 * U_p * 4)
    vmem_limit = int(min(64 * 1024 * 1024, max(32 * 1024 * 1024, 2 * vmem_needed)))

    kernel = functools.partial(_residual_kernel, use_act=use_act,
                               compute_dtype=cdt)

    out_p = pl.pallas_call(
        kernel,
        out_shape=jax.ShapeDtypeStruct((N_p, U_p), out_dtype),
        grid_spec=pltpu.PrefetchScalarGridSpec(
            num_scalar_prefetch=0,
            grid=(grid_n,),
            in_specs=[
                pl.BlockSpec((tile_n, U_p), lambda i: (i, 0)),   # x tile
                pl.BlockSpec((U_p, U_p), lambda i: (0, 0)),      # W1^T (resident)
                pl.BlockSpec((1, U_p), lambda i: (0, 0)),        # b1
                pl.BlockSpec((U_p, U_p), lambda i: (0, 0)),      # W2^T (resident)
                pl.BlockSpec((1, U_p), lambda i: (0, 0)),        # b2
            ],
            out_specs=pl.BlockSpec((tile_n, U_p), lambda i: (i, 0)),
        ),
        compiler_params=pltpu.CompilerParams(
            dimension_semantics=("parallel",),     # shards row tiles across TCs on v7x
            vmem_limit_bytes=vmem_limit,
        ),
        cost_estimate=pl.CostEstimate(
            flops=flops,
            transcendentals=transcendentals,
            bytes_accessed=bytes_accessed,
        ),
    )(x_p, w1_t, b1_p, w2_t, b2_p)

    return out_p[:N, :U]


# ----------------------------------------------------------------------------
# Deterministic GlorotOrthogonal-style init (orthogonal, then glorot-scaled).
# ----------------------------------------------------------------------------
def glorot_orthogonal(key, fan_out, fan_in, scale=2.0, dtype=jnp.float32):
    a = jax.random.normal(key, (fan_out, fan_in), dtype=jnp.float32)
    q, _ = jnp.linalg.qr(a)
    q = q[:fan_out, :fan_in]
    var = jnp.var(q)
    q = q * jnp.sqrt(scale / ((fan_in + fan_out) * var))
    return q.astype(dtype)


# ----------------------------------------------------------------------------
# Pure-JAX reference for correctness check.
# ----------------------------------------------------------------------------
def residual_layer_ref(x, w1, b1, w2, b2, use_act=True):
    h = x @ w1.T + b1
    if use_act:
        h = h * jax.nn.sigmoid(h)
    h = h @ w2.T + b2
    if use_act:
        h = h * jax.nn.sigmoid(h)
    return x + h


if __name__ == "__main__":
    key = jax.random.PRNGKey(0)
    k_x, k_w1, k_w2 = jax.random.split(key, 3)

    N, U = 64, 32          # small demo: 64 rows, 32 hidden units
    x = jax.random.normal(k_x, (N, U), dtype=jnp.float32)

    w1 = glorot_orthogonal(k_w1, U, U)   # dense_1.weight (out, in)
    b1 = jnp.zeros((U,), jnp.float32)    # dense_1.bias
    w2 = glorot_orthogonal(k_w2, U, U)   # dense_2.weight
    b2 = jnp.zeros((U,), jnp.float32)    # dense_2.bias

    ref = residual_layer_ref(x, w1, b1, w2, b2, use_act=True)

    # Exact-dtype (f32 compute) path: tight check against the reference.
    out_f32 = residual_layer(x, w1, b1, w2, b2, use_act=True, compute_dtype=None)
    out_f32 = jax.block_until_ready(out_f32)
    assert out_f32.shape == (N, U)
    assert jnp.allclose(out_f32, ref, atol=1e-5, rtol=1e-5), "f32 path mismatch"

    # Default fast path: bf16 matmul inputs, f32 accumulation (loose tolerance).
    out_bf16 = residual_layer(x, w1, b1, w2, b2, use_act=True)
    out_bf16 = jax.block_until_ready(out_bf16)
    assert out_bf16.shape == (N, U)
    assert jnp.allclose(out_bf16, ref, atol=1e-1, rtol=1e-1), "bf16 path mismatch"

    print("KERNEL_OK")
</pallas_src>

<mosaic_0001>
module attributes {stable_mosaic.version = 11 : i64} {
  func.func @_residual_kernel(%arg0: i32, %arg1: memref<64x128xf32, #tpu.memory_space<vmem>>, %arg2: memref<128x128xf32, #tpu.memory_space<vmem>>, %arg3: memref<1x128xf32, #tpu.memory_space<vmem>>, %arg4: memref<128x128xf32, #tpu.memory_space<vmem>>, %arg5: memref<1x128xf32, #tpu.memory_space<vmem>>, %arg6: memref<64x128xf32, #tpu.memory_space<vmem>>) attributes {dimension_semantics = [#tpu.dimension_semantics<parallel>], iteration_bounds = array<i64: 1>, scalar_prefetch = 0 : i64, scratch_operands = 0 : i64, tpu.core_type = #tpu.core_type<tc>, window_params = [{transform_indices = @transform_0, window_bounds = array<i64: 64, 128>}, {pipeline_mode = #tpu.pipeline_mode<synchronous>, transform_indices = @transform_1, window_bounds = array<i64: 128, 128>}, {pipeline_mode = #tpu.pipeline_mode<synchronous>, transform_indices = @transform_2, window_bounds = array<i64: 1, 128>}, {pipeline_mode = #tpu.pipeline_mode<synchronous>, transform_indices = @transform_3, window_bounds = array<i64: 128, 128>}, {pipeline_mode = #tpu.pipeline_mode<synchronous>, transform_indices = @transform_4, window_bounds = array<i64: 1, 128>}, {transform_indices = @transform_5, window_bounds = array<i64: 64, 128>}]} {
    %c0 = arith.constant 0 : index
    %c0_0 = arith.constant 0 : index
    %0 = vector.load %arg1[%c0, %c0_0] : memref<64x128xf32, #tpu.memory_space<vmem>>, vector<64x128xf32>
    %c0_1 = arith.constant 0 : index
    %c0_2 = arith.constant 0 : index
    %1 = vector.load %arg2[%c0_1, %c0_2] : memref<128x128xf32, #tpu.memory_space<vmem>>, vector<128x128xf32>
    %cst = arith.constant dense<0.000000e+00> : vector<64x128xf32>
    %2 = tpu.matmul %0, %1, %cst {dimension_numbers = #tpu.dot_dimension_numbers<[1], [0], [0], [1], [0, 0, 1, 1], [], []>} : vector<64x128xf32>, vector<128x128xf32>, vector<64x128xf32> -> vector<64x128xf32>
    %c0_3 = arith.constant 0 : index
    %c0_4 = arith.constant 0 : index
    %3 = vector.load %arg3[%c0_3, %c0_4] : memref<1x128xf32, #tpu.memory_space<vmem>>, vector<1x128xf32>
    %4 = vector.broadcast %3 : vector<1x128xf32> to vector<64x128xf32>
    %5 = arith.addf %2, %4 : vector<64x128xf32>
    %6 = arith.negf %5 : vector<64x128xf32>
    %7 = math.exp %6 : vector<64x128xf32>
    %cst_5 = arith.constant 1.000000e+00 : f32
    %8 = vector.broadcast %cst_5 : f32 to vector<64x128xf32>
    %9 = arith.addf %8, %7 : vector<64x128xf32>
    %10 = arith.divf %8, %9 : vector<64x128xf32>
    %11 = arith.mulf %5, %10 : vector<64x128xf32>
    %c0_6 = arith.constant 0 : index
    %c0_7 = arith.constant 0 : index
    %12 = vector.load %arg4[%c0_6, %c0_7] : memref<128x128xf32, #tpu.memory_space<vmem>>, vector<128x128xf32>
    %cst_8 = arith.constant dense<0.000000e+00> : vector<64x128xf32>
    %13 = tpu.matmul %11, %12, %cst_8 {dimension_numbers = #tpu.dot_dimension_numbers<[1], [0], [0], [1], [0, 0, 1, 1], [], []>} : vector<64x128xf32>, vector<128x128xf32>, vector<64x128xf32> -> vector<64x128xf32>
    %c0_9 = arith.constant 0 : index
    %c0_10 = arith.constant 0 : index
    %14 = vector.load %arg5[%c0_9, %c0_10] : memref<1x128xf32, #tpu.memory_space<vmem>>, vector<1x128xf32>
    %15 = vector.broadcast %14 : vector<1x128xf32> to vector<64x128xf32>
    %16 = arith.addf %13, %15 : vector<64x128xf32>
    %17 = arith.negf %16 : vector<64x128xf32>
    %18 = math.exp %17 : vector<64x128xf32>
    %cst_11 = arith.constant 1.000000e+00 : f32
    %19 = vector.broadcast %cst_11 : f32 to vector<64x128xf32>
    %20 = arith.addf %19, %18 : vector<64x128xf32>
    %21 = arith.divf %19, %20 : vector<64x128xf32>
    %22 = arith.mulf %16, %21 : vector<64x128xf32>
    %23 = arith.addf %0, %22 : vector<64x128xf32>
    %c0_12 = arith.constant 0 : index
    %c0_13 = arith.constant 0 : index
    %24 = vector.load %arg6[%c0_12, %c0_13] : memref<64x128xf32, #tpu.memory_space<vmem>>, vector<64x128xf32>
    tpu.vector_store %arg6[%c0_12, %c0_13], %23 {strides = array<i32>} : memref<64x128xf32, #tpu.memory_space<vmem>>, vector<64x128xf32>,
    return
  }
  func.func @transform_0(%arg0: i32) -> (i32, i32) {
    %c0_i32 = arith.constant 0 : i32
    %c0_i32_0 = arith.constant 0 : i32
    return %arg0, %c0_i32 : i32, i32
  }
  func.func @transform_1(%arg0: i32) -> (i32, i32) {
    %c0_i32 = arith.constant 0 : i32
    %c0_i32_0 = arith.constant 0 : i32
    %c0_i32_1 = arith.constant 0 : i32
    return %c0_i32, %c0_i32_0 : i32, i32
  }
  func.func @transform_2(%arg0: i32) -> (i32, i32) {
    %c0_i32 = arith.constant 0 : i32
    %c0_i32_0 = arith.constant 0 : i32
    %c0_i32_1 = arith.constant 0 : i32
    return %c0_i32, %c0_i32_0 : i32, i32
  }
  func.func @transform_3(%arg0: i32) -> (i32, i32) {
    %c0_i32 = arith.constant 0 : i32
    %c0_i32_0 = arith.constant 0 : i32
    %c0_i32_1 = arith.constant 0 : i32
    return %c0_i32, %c0_i32_0 : i32, i32
  }
  func.func @transform_4(%arg0: i32) -> (i32, i32) {
    %c0_i32 = arith.constant 0 : i32
    %c0_i32_0 = arith.constant 0 : i32
    %c0_i32_1 = arith.constant 0 : i32
    return %c0_i32, %c0_i32_0 : i32, i32
  }
  func.func @transform_5(%arg0: i32) -> (i32, i32) {
    %c0_i32 = arith.constant 0 : i32
    %c0_i32_0 = arith.constant 0 : i32
    return %arg0, %c0_i32 : i32, i32
  }
}

</mosaic_0001>

<llo_original>
// kernel: tpu_custom_call.1
$region0: #{tpu_custom_call.1}
  #allocation0 [shape = 'u32[]', space=smem, size = 0x4, offset = 0x4, fixed_abs, tag = 'smem constant byte address 0x4 - core index']
  #allocation1 [shape = 'u32[144,128]{1,0:T(1,128)}', space=vmem, size = 0x12000, scoped, tag = 'internal scratch']
  %s0 = inlined_call_operand.hbm [shape: f32[64,128], index: 0, kind: input, shape index: {}]
  %s1 = inlined_call_operand.hbm [shape: f32[128,128], index: 1, kind: input, shape index: {}]
  %s2 = inlined_call_operand.vmem [shape: f32[1,128], index: 2, kind: input, shape index: {}]
  %s3 = inlined_call_operand.hbm [shape: f32[128,128], index: 3, kind: input, shape index: {}]
  %s4 = inlined_call_operand.vmem [shape: f32[1,128], index: 4, kind: input, shape index: {}]
  %s5 = inlined_call_operand.hbm [shape: f32[64,128], index: 5, kind: output, shape index: {}]
  %s6 = sld [smem:[#allocation0]]
  $region42: #{tpu_custom_call.1} parent=0
    _
  %s8 = ssub.s32 1, %s6
  %s9 = scalar_select 0, %s8, %s6
  $region1: #{tpu_custom_call.1} parent=0
    #allocation2 [shape = 'u8[32768]{0}', space=vmem, size = 0x8000, scoped, tag = 'input window, operand 0, single buffered']
    #allocation3 [shape = 's32[1]{0}', space=sflag, size = 0x4, scoped, tag = 'scoped memory for tpu_custom_call.1']
    #allocation4 [shape = 's32[1]{0}', space=sflag, size = 0x4, scoped, tag = 'scoped memory for tpu_custom_call.1']
    #allocation5 [shape = 'u8[65536]{0}', space=vmem, size = 0x10000, scoped, tag = 'input window, operand 1, single buffered']
    #allocation6 [shape = 's32[1]{0}', space=sflag, size = 0x4, scoped, tag = 'scoped memory for tpu_custom_call.1']
    #allocation7 [shape = 'u8[65536]{0}', space=vmem, size = 0x10000, scoped, tag = 'input window, operand 3, single buffered']
    #allocation8 [shape = 'u8[32768]{0}', space=vmem, size = 0x8000, scoped, tag = 'output window, operand 0, single buffered']
    %10 = vsyncpa [#allocation3], 0
    %11 = vsyncpa [#allocation6], 0
    %12 = vsyncpa [#allocation4], 0
    // Predicated region
    $region2: #{tpu_custom_call.1} parent=1 // pred_check
      _
    $region3: #{tpu_custom_call.1} parent=1 // pred_check_branch
      %14 = sbr.rel (0) target = $region5
    $region4: #{tpu_custom_call.1} parent=1 // pred_region
      %s16 = ssub.s32 1024, 1024
      %17 = vsyncadd [#allocation3], %s16
      %s18 = sshll.u32 [#allocation2], 4
      %s19 = int_to_ptr.vmem [resolvable:$true] %s18
      %24 = dma.hbm_to_vmem [thread:$0]  %s0, 1024, %s19, [#allocation3], 128, 128, 8
    $region5: #{tpu_custom_call.1} parent=1 // pred_fallthru
      _
    // Predicated region
    $region6: #{tpu_custom_call.1} parent=1 // pred_check
      _
    $region7: #{tpu_custom_call.1} parent=1 // pred_check_branch
      %26 = sbr.rel (0) target = $region9
    $region8: #{tpu_custom_call.1} parent=1 // pred_region
      %s28 = ssub.s32 2048, 2048
      %29 = vsyncadd [#allocation6], %s28
      %s30 = sshll.u32 [#allocation5], 4
      %s31 = int_to_ptr.vmem [resolvable:$true] %s30
      %36 = dma.hbm_to_vmem [thread:$0]  %s1, 2048, %s31, [#allocation6], 128, 128, 8
    $region9: #{tpu_custom_call.1} parent=1 // pred_fallthru
      _
    // Predicated region
    $region10: #{tpu_custom_call.1} parent=1 // pred_check
      _
    $region11: #{tpu_custom_call.1} parent=1 // pred_check_branch
      %38 = sbr.rel (0) target = $region13
    $region12: #{tpu_custom_call.1} parent=1 // pred_region
      _
    $region13: #{tpu_custom_call.1} parent=1 // pred_fallthru
      _
    // Predicated region
    $region14: #{tpu_custom_call.1} parent=1 // pred_check
      _
    $region15: #{tpu_custom_call.1} parent=1 // pred_check_branch
      %40 = sbr.rel (0) target = $region17
    $region16: #{tpu_custom_call.1} parent=1 // pred_region
      %s42 = ssub.s32 2048, 2048
      %43 = vsyncadd [#allocation6], %s42
      %s44 = sshll.u32 [#allocation7], 4
      %s45 = int_to_ptr.vmem [resolvable:$true] %s44
      %50 = dma.hbm_to_vmem [thread:$0]  %s3, 2048, %s45, [#allocation6], 128, 128, 8
    $region17: #{tpu_custom_call.1} parent=1 // pred_fallthru
      _
    // Predicated region
    $region18: #{tpu_custom_call.1} parent=1 // pred_check
      _
    $region19: #{tpu_custom_call.1} parent=1 // pred_check_branch
      %52 = sbr.rel (0) target = $region21
    $region20: #{tpu_custom_call.1} parent=1 // pred_region
      _
    $region21: #{tpu_custom_call.1} parent=1 // pred_fallthru
      _
    // Predicated region
    $region22: #{tpu_custom_call.1} parent=1 // pred_check
      _
    $region23: #{tpu_custom_call.1} parent=1 // pred_check_branch
      %54 = sbr.rel (0) target = $region25
    $region24: #{tpu_custom_call.1} parent=1 // pred_region
      %55 = dma.done [#allocation3], 1024
    $region25: #{tpu_custom_call.1} parent=1 // pred_fallthru
      _
    // Predicated region
    $region26: #{tpu_custom_call.1} parent=1 // pred_check
      _
    $region27: #{tpu_custom_call.1} parent=1 // pred_check_branch
      %57 = sbr.rel (0) target = $region29
    $region28: #{tpu_custom_call.1} parent=1 // pred_region
      %58 = dma.done [#allocation6], 2048
    $region29: #{tpu_custom_call.1} parent=1 // pred_fallthru
      _
    // Predicated region
    $region30: #{tpu_custom_call.1} parent=1 // pred_check
      _
    $region31: #{tpu_custom_call.1} parent=1 // pred_check_branch
      %60 = sbr.rel (0) target = $region33
    $region32: #{tpu_custom_call.1} parent=1 // pred_region
      %61 = dma.done [#allocation6], 2048
    $region33: #{tpu_custom_call.1} parent=1 // pred_fallthru
      _
    %v62 = vld [vmem:[#allocation2] sm:$0xff]
    %v63 = vld [vmem:[#allocation2 + $0x8] sm:$0xff]
    %v64 = vld [vmem:[#allocation2 + $0x10] sm:$0xff]
    %v65 = vld [vmem:[#allocation2 + $0x18] sm:$0xff]
    %v66 = vld [vmem:[#allocation2 + $0x20] sm:$0xff]
    %v67 = vld [vmem:[#allocation2 + $0x28] sm:$0xff]
    %v68 = vld [vmem:[#allocation2 + $0x30] sm:$0xff]
    %v69 = vld [vmem:[#allocation2 + $0x38] sm:$0xff]
    %v70 = vld [vmem:[#allocation5] sm:$0xff]
    %v71 = vld [vmem:[#allocation5 + $0x8] sm:$0xff]
    %v72 = vld [vmem:[#allocation5 + $0x10] sm:$0xff]
    %v73 = vld [vmem:[#allocation5 + $0x18] sm:$0xff]
    %v74 = vld [vmem:[#allocation5 + $0x20] sm:$0xff]
    %v75 = vld [vmem:[#allocation5 + $0x28] sm:$0xff]
    %v76 = vld [vmem:[#allocation5 + $0x30] sm:$0xff]
    %v77 = vld [vmem:[#allocation5 + $0x38] sm:$0xff]
    %v78 = vld [vmem:[#allocation5 + $0x40] sm:$0xff]
    %v79 = vld [vmem:[#allocation5 + $0x48] sm:$0xff]
    %v80 = vld [vmem:[#allocation5 + $0x50] sm:$0xff]
    %v81 = vld [vmem:[#allocation5 + $0x58] sm:$0xff]
    %v82 = vld [vmem:[#allocation5 + $0x60] sm:$0xff]
    %v83 = vld [vmem:[#allocation5 + $0x68] sm:$0xff]
    %v84 = vld [vmem:[#allocation5 + $0x70] sm:$0xff]
    %v85 = vld [vmem:[#allocation5 + $0x78] sm:$0xff]
    %v86 = vld [vmem:[%s2] sm:$0x1]
    %v88 = vlaneseq
    %v89 = vshrl.u32 %v88, 7
    %v90 = vsub.s32 0, %v89
    %v91 = vrot.slane %v86, %v90
    %93 = vmatprep.subr.mxu0 0.0
    %94 = vmatpush1.msra.mxu0 %v70
    %95 = vmatprep.subr.mxu0 0.0
    %96 = vmatpush1.msra.mxu0 %v71
    %97 = vmatprep.subr.mxu0 0.0
    %98 = vmatpush1.msra.mxu0 %v72
    %99 = vmatprep.subr.mxu0 0.0
    %100 = vmatpush1.msra.mxu0 %v73
    %101 = vmatprep.subr.mxu0 0.0
    %102 = vmatpush1.msra.mxu0 %v74
    %103 = vmatprep.subr.mxu0 0.0
    %104 = vmatpush1.msra.mxu0 %v75
    %105 = vmatprep.subr.mxu0 0.0
    %106 = vmatpush1.msra.mxu0 %v76
    %107 = vmatprep.subr.mxu0 0.0
    %108 = vmatpush1.msra.mxu0 %v77
    %109 = vmatprep.subr.mxu0 0.0
    %110 = vmatpush1.msra.mxu0 %v78
    %111 = vmatprep.subr.mxu0 0.0
    %112 = vmatpush1.msra.mxu0 %v79
    %113 = vmatprep.subr.mxu0 0.0
    %114 = vmatpush1.msra.mxu0 %v80
    %115 = vmatprep.subr.mxu0 0.0
    %116 = vmatpush1.msra.mxu0 %v81
    %117 = vmatprep.subr.mxu0 0.0
    %118 = vmatpush1.msra.mxu0 %v82
    %119 = vmatprep.subr.mxu0 0.0
    %120 = vmatpush1.msra.mxu0 %v83
    %121 = vmatprep.subr.mxu0 0.0
    %122 = vmatpush1.msra.mxu0 %v84
    %123 = vmatprep.subr.mxu0 0.0
    %124 = vmatpush1.msra.mxu0 %v85
    %125 = vmatprep.subr.mxu0 0.0
    %126 = vmatpush1.msra.mxu0 0.0
    %127 = vmatprep.subr.mxu0 0.0
    %128 = vmatpush1.msra.mxu0 0.0
    %129 = vmatprep.subr.mxu0 0.0
    %130 = vmatpush1.msra.mxu0 0.0
    %131 = vmatprep.subr.mxu0 0.0
    %132 = vmatpush1.msra.mxu0 0.0
    %133 = vmatprep.subr.mxu0 0.0
    %134 = vmatpush1.msra.mxu0 0.0
    %135 = vmatprep.subr.mxu0 0.0
    %136 = vmatpush1.msra.mxu0 0.0
    %137 = vmatprep.subr.mxu0 0.0
    %138 = vmatpush1.msra.mxu0 0.0
    %139 = vmatprep.subr.mxu0 0.0
    %140 = vmatpush1.msra.mxu0 0.0
    %141 = vmatprep.subr.mxu0 0.0
    %142 = vmatpush1.msra.mxu0 0.0
    %143 = vmatprep.subr.mxu0 0.0
    %144 = vmatpush1.msra.mxu0 0.0
    %145 = vmatprep.subr.mxu0 0.0
    %146 = vmatpush1.msra.mxu0 0.0
    %147 = vmatprep.subr.mxu0 0.0
    %148 = vmatpush1.msra.mxu0 0.0
    %149 = vmatprep.subr.mxu0 0.0
    %150 = vmatpush1.msra.mxu0 0.0
    %151 = vmatprep.subr.mxu0 0.0
    %152 = vmatpush1.msra.mxu0 0.0
    %153 = vmatprep.subr.mxu0 0.0
    %154 = vmatpush1.msra.mxu0 0.0
    %155 = vmatprep.subr.mxu0 0.0
    %156 = vmatpush1.msra.mxu0 0.0
    %157 = vmatprep.mubr.f32.mxu0 0.0
    %158 = vmatmul.mubr.f32.gmra.mrb[0].mxu0 %v62
    %v159 = vpop.f32.mrb[0].mxu0
    %v160 = vadd.f32 %v91, %v159
    %v161 = vpop.f32.mrb[0].mxu0
    %162 = vmatprep.mubr.f32.mxu0 0.0
    %163 = vmatmul.mubr.f32.gmra.mrb[0].mxu0 %v63
    %v164 = vpop.f32.mrb[0].mxu0
    %v165 = vadd.f32 %v91, %v164
    %v166 = vpop.f32.mrb[0].mxu0
    %167 = vmatprep.mubr.f32.mxu0 0.0
    %168 = vmatmul.mubr.f32.gmra.mrb[0].mxu0 %v64
    %v169 = vpop.f32.mrb[0].mxu0
    %v170 = vadd.f32 %v91, %v169
    %v171 = vpop.f32.mrb[0].mxu0
    %172 = vmatprep.mubr.f32.mxu0 0.0
    %173 = vmatmul.mubr.f32.gmra.mrb[0].mxu0 %v65
    %v174 = vpop.f32.mrb[0].mxu0
    %v175 = vadd.f32 %v91, %v174
    %v176 = vpop.f32.mrb[0].mxu0
    %177 = vmatprep.mubr.f32.mxu0 0.0
    %178 = vmatmul.mubr.f32.gmra.mrb[0].mxu0 %v66
    %v179 = vpop.f32.mrb[0].mxu0
    %v180 = vadd.f32 %v91, %v179
    %v181 = vpop.f32.mrb[0].mxu0
    %182 = vmatprep.mubr.f32.mxu0 0.0
    %183 = vmatmul.mubr.f32.gmra.mrb[0].mxu0 %v67
    %v184 = vpop.f32.mrb[0].mxu0
    %v185 = vadd.f32 %v91, %v184
    %v186 = vpop.f32.mrb[0].mxu0
    %187 = vmatprep.mubr.f32.mxu0 0.0
    %188 = vmatmul.mubr.f32.gmra.mrb[0].mxu0 %v68
    %v189 = vpop.f32.mrb[0].mxu0
    %v190 = vadd.f32 %v91, %v189
    %v191 = vpop.f32.mrb[0].mxu0
    %192 = vmatprep.mubr.f32.mxu0 0.0
    %193 = vmatmul.mubr.f32.gmra.mrb[0].mxu0 %v69
    %v194 = vpop.f32.mrb[0].mxu0
    %v195 = vadd.f32 %v91, %v194
    %v196 = vpop.f32.mrb[0].mxu0
    %197 = vdwg.mxu0
    %v198 = vxor.u32 %v160, 2147483648
    %v199 = vxor.u32 %v165, 2147483648
    %v200 = vxor.u32 %v170, 2147483648
    %v201 = vxor.u32 %v175, 2147483648
    %v202 = vxor.u32 %v180, 2147483648
    %v203 = vxor.u32 %v185, 2147483648
    %v204 = vxor.u32 %v190, 2147483648
    %v205 = vxor.u32 %v195, 2147483648
    %v206 = vmul.f32 %v198, 1.442695
    %v207 = vpow.pop %v206
    %v208 = vmul.f32 %v199, 1.442695
    %v209 = vpow.pop %v208
    %v210 = vmul.f32 %v200, 1.442695
    %v211 = vpow.pop %v210
    %v212 = vmul.f32 %v201, 1.442695
    %v213 = vpow.pop %v212
    %v214 = vmul.f32 %v202, 1.442695
    %v215 = vpow.pop %v214
    %v216 = vmul.f32 %v203, 1.442695
    %v217 = vpow.pop %v216
    %v218 = vmul.f32 %v204, 1.442695
    %v219 = vpow.pop %v218
    %v220 = vmul.f32 %v205, 1.442695
    %v221 = vpow.pop %v220
    %v222 = vadd.f32 %v207, 1.0
    %v223 = vadd.f32 %v209, 1.0
    %v224 = vadd.f32 %v211, 1.0
    %v225 = vadd.f32 %v213, 1.0
    %v226 = vadd.f32 %v215, 1.0
    %v227 = vadd.f32 %v217, 1.0
    %v228 = vadd.f32 %v219, 1.0
    %v229 = vadd.f32 %v221, 1.0
    %v230 = vrcp.pop %v222
    %v231 = vmul.f32 1.0, %v230
    %v232 = vrcp.pop %v223
    %v233 = vmul.f32 1.0, %v232
    %v234 = vrcp.pop %v224
    %v235 = vmul.f32 1.0, %v234
    %v236 = vrcp.pop %v225
    %v237 = vmul.f32 1.0, %v236
    %v238 = vrcp.pop %v226
    %v239 = vmul.f32 1.0, %v238
    %v240 = vrcp.pop %v227
    %v241 = vmul.f32 1.0, %v240
    %v242 = vrcp.pop %v228
    %v243 = vmul.f32 1.0, %v242
    %v244 = vrcp.pop %v229
    %v245 = vmul.f32 1.0, %v244
    %v246 = vmul.f32 %v160, %v231
    %v247 = vmul.f32 %v165, %v233
    %v248 = vmul.f32 %v170, %v235
    %v249 = vmul.f32 %v175, %v237
    %v250 = vmul.f32 %v180, %v239
    %v251 = vmul.f32 %v185, %v241
    %v252 = vmul.f32 %v190, %v243
    %v253 = vmul.f32 %v195, %v245
    %v254 = vld [vmem:[#allocation7] sm:$0xff]
    %v255 = vld [vmem:[#allocation7 + $0x8] sm:$0xff]
    %v256 = vld [vmem:[#allocation7 + $0x10] sm:$0xff]
    %v257 = vld [vmem:[#allocation7 + $0x18] sm:$0xff]
    %v258 = vld [vmem:[#allocation7 + $0x20] sm:$0xff]
    %v259 = vld [vmem:[#allocation7 + $0x28] sm:$0xff]
    %v260 = vld [vmem:[#allocation7 + $0x30] sm:$0xff]
    %v261 = vld [vmem:[#allocation7 + $0x38] sm:$0xff]
    %v262 = vld [vmem:[#allocation7 + $0x40] sm:$0xff]
    %v263 = vld [vmem:[#allocation7 + $0x48] sm:$0xff]
    %v264 = vld [vmem:[#allocation7 + $0x50] sm:$0xff]
    %v265 = vld [vmem:[#allocation7 + $0x58] sm:$0xff]
    %v266 = vld [vmem:[#allocation7 + $0x60] sm:$0xff]
    %v267 = vld [vmem:[#allocation7 + $0x68] sm:$0xff]
    %v268 = vld [vmem:[#allocation7 + $0x70] sm:$0xff]
    %v269 = vld [vmem:[#allocation7 + $0x78] sm:$0xff]
    %v270 = vld [vmem:[%s4] sm:$0x1]
    %v272 = vlaneseq
    %v273 = vshrl.u32 %v272, 7
    %v274 = vsub.s32 0, %v273
    %v275 = vrot.slane %v270, %v274
    %277 = vmatprep.subr.mxu0 0.0
    %278 = vmatpush1.msra.mxu0 %v254
    %279 = vmatprep.subr.mxu0 0.0
    %280 = vmatpush1.msra.mxu0 %v255
    %281 = vmatprep.subr.mxu0 0.0
    %282 = vmatpush1.msra.mxu0 %v256
    %283 = vmatprep.subr.mxu0 0.0
    %284 = vmatpush1.msra.mxu0 %v257
    %285 = vmatprep.subr.mxu0 0.0
    %286 = vmatpush1.msra.mxu0 %v258
    %287 = vmatprep.subr.mxu0 0.0
    %288 = vmatpush1.msra.mxu0 %v259
    %289 = vmatprep.subr.mxu0 0.0
    %290 = vmatpush1.msra.mxu0 %v260
    %291 = vmatprep.subr.mxu0 0.0
    %292 = vmatpush1.msra.mxu0 %v261
    %293 = vmatprep.subr.mxu0 0.0
    %294 = vmatpush1.msra.mxu0 %v262
    %295 = vmatprep.subr.mxu0 0.0
    %296 = vmatpush1.msra.mxu0 %v263
    %297 = vmatprep.subr.mxu0 0.0
    %298 = vmatpush1.msra.mxu0 %v264
    %299 = vmatprep.subr.mxu0 0.0
    %300 = vmatpush1.msra.mxu0 %v265
    %301 = vmatprep.subr.mxu0 0.0
    %302 = vmatpush1.msra.mxu0 %v266
    %303 = vmatprep.subr.mxu0 0.0
    %304 = vmatpush1.msra.mxu0 %v267
    %305 = vmatprep.subr.mxu0 0.0
    %306 = vmatpush1.msra.mxu0 %v268
    %307 = vmatprep.subr.mxu0 0.0
    %308 = vmatpush1.msra.mxu0 %v269
    %309 = vmatprep.subr.mxu0 0.0
    %310 = vmatpush1.msra.mxu0 0.0
    %311 = vmatprep.subr.mxu0 0.0
    %312 = vmatpush1.msra.mxu0 0.0
    %313 = vmatprep.subr.mxu0 0.0
    %314 = vmatpush1.msra.mxu0 0.0
    %315 = vmatprep.subr.mxu0 0.0
    %316 = vmatpush1.msra.mxu0 0.0
    %317 = vmatprep.subr.mxu0 0.0
    %318 = vmatpush1.msra.mxu0 0.0
    %319 = vmatprep.subr.mxu0 0.0
    %320 = vmatpush1.msra.mxu0 0.0
    %321 = vmatprep.subr.mxu0 0.0
    %322 = vmatpush1.msra.mxu0 0.0
    %323 = vmatprep.subr.mxu0 0.0
    %324 = vmatpush1.msra.mxu0 0.0
    %325 = vmatprep.subr.mxu0 0.0
    %326 = vmatpush1.msra.mxu0 0.0
    %327 = vmatprep.subr.mxu0 0.0
    %328 = vmatpush1.msra.mxu0 0.0
    %329 = vmatprep.subr.mxu0 0.0
    %330 = vmatpush1.msra.mxu0 0.0
    %331 = vmatprep.subr.mxu0 0.0
    %332 = vmatpush1.msra.mxu0 0.0
    %333 = vmatprep.subr.mxu0 0.0
    %334 = vmatpush1.msra.mxu0 0.0
    %335 = vmatprep.subr.mxu0 0.0
    %336 = vmatpush1.msra.mxu0 0.0
    %337 = vmatprep.subr.mxu0 0.0
    %338 = vmatpush1.msra.mxu0 0.0
    %339 = vmatprep.subr.mxu0 0.0
    %340 = vmatpush1.msra.mxu0 0.0
    %341 = vmatprep.mubr.f32.mxu0 0.0
    %342 = vmatmul.mubr.f32.gmra.mrb[0].mxu0 %v246
    %v343 = vpop.f32.mrb[0].mxu0
    %v344 = vadd.f32 %v275, %v343
    %v345 = vpop.f32.mrb[0].mxu0
    %346 = vmatprep.mubr.f32.mxu0 0.0
    %347 = vmatmul.mubr.f32.gmra.mrb[0].mxu0 %v247
    %v348 = vpop.f32.mrb[0].mxu0
    %v349 = vadd.f32 %v275, %v348
    %v350 = vpop.f32.mrb[0].mxu0
    %351 = vmatprep.mubr.f32.mxu0 0.0
    %352 = vmatmul.mubr.f32.gmra.mrb[0].mxu0 %v248
    %v353 = vpop.f32.mrb[0].mxu0
    %v354 = vadd.f32 %v275, %v353
    %v355 = vpop.f32.mrb[0].mxu0
    %356 = vmatprep.mubr.f32.mxu0 0.0
    %357 = vmatmul.mubr.f32.gmra.mrb[0].mxu0 %v249
    %v358 = vpop.f32.mrb[0].mxu0
    %v359 = vadd.f32 %v275, %v358
    %v360 = vpop.f32.mrb[0].mxu0
    %361 = vmatprep.mubr.f32.mxu0 0.0
    %362 = vmatmul.mubr.f32.gmra.mrb[0].mxu0 %v250
    %v363 = vpop.f32.mrb[0].mxu0
    %v364 = vadd.f32 %v275, %v363
    %v365 = vpop.f32.mrb[0].mxu0
    %366 = vmatprep.mubr.f32.mxu0 0.0
    %367 = vmatmul.mubr.f32.gmra.mrb[0].mxu0 %v251
    %v368 = vpop.f32.mrb[0].mxu0
    %v369 = vadd.f32 %v275, %v368
    %v370 = vpop.f32.mrb[0].mxu0
    %371 = vmatprep.mubr.f32.mxu0 0.0
    %372 = vmatmul.mubr.f32.gmra.mrb[0].mxu0 %v252
    %v373 = vpop.f32.mrb[0].mxu0
    %v374 = vadd.f32 %v275, %v373
    %v375 = vpop.f32.mrb[0].mxu0
    %376 = vmatprep.mubr.f32.mxu0 0.0
    %377 = vmatmul.mubr.f32.gmra.mrb[0].mxu0 %v253
    %v378 = vpop.f32.mrb[0].mxu0
    %v379 = vadd.f32 %v275, %v378
    %v380 = vpop.f32.mrb[0].mxu0
    %381 = vdwg.mxu0
    %v382 = vxor.u32 %v344, 2147483648
    %v383 = vxor.u32 %v349, 2147483648
    %v384 = vxor.u32 %v354, 2147483648
    %v385 = vxor.u32 %v359, 2147483648
    %v386 = vxor.u32 %v364, 2147483648
    %v387 = vxor.u32 %v369, 2147483648
    %v388 = vxor.u32 %v374, 2147483648
    %v389 = vxor.u32 %v379, 2147483648
    %v390 = vmul.f32 %v382, 1.442695
    %v391 = vpow.pop %v390
    %v392 = vmul.f32 %v383, 1.442695
    %v393 = vpow.pop %v392
    %v394 = vmul.f32 %v384, 1.442695
    %v395 = vpow.pop %v394
    %v396 = vmul.f32 %v385, 1.442695
    %v397 = vpow.pop %v396
    %v398 = vmul.f32 %v386, 1.442695
    %v399 = vpow.pop %v398
    %v400 = vmul.f32 %v387, 1.442695
    %v401 = vpow.pop %v400
    %v402 = vmul.f32 %v388, 1.442695
    %v403 = vpow.pop %v402
    %v404 = vmul.f32 %v389, 1.442695
    %v405 = vpow.pop %v404
    %v406 = vadd.f32 %v391, 1.0
    %v407 = vadd.f32 %v393, 1.0
    %v408 = vadd.f32 %v395, 1.0
    %v409 = vadd.f32 %v397, 1.0
    %v410 = vadd.f32 %v399, 1.0
    %v411 = vadd.f32 %v401, 1.0
    %v412 = vadd.f32 %v403, 1.0
    %v413 = vadd.f32 %v405, 1.0
    %v414 = vrcp.pop %v406
    %v415 = vmul.f32 1.0, %v414
    %v416 = vrcp.pop %v407
    %v417 = vmul.f32 1.0, %v416
    %v418 = vrcp.pop %v408
    %v419 = vmul.f32 1.0, %v418
    %v420 = vrcp.pop %v409
    %v421 = vmul.f32 1.0, %v420
    %v422 = vrcp.pop %v410
    %v423 = vmul.f32 1.0, %v422
    %v424 = vrcp.pop %v411
    %v425 = vmul.f32 1.0, %v424
    %v426 = vrcp.pop %v412
    %v427 = vmul.f32 1.0, %v426
    %v428 = vrcp.pop %v413
    %v429 = vmul.f32 1.0, %v428
    %v430 = vmul.f32 %v344, %v415
    %v431 = vmul.f32 %v349, %v417
    %v432 = vmul.f32 %v354, %v419
    %v433 = vmul.f32 %v359, %v421
    %v434 = vmul.f32 %v364, %v423
    %v435 = vmul.f32 %v369, %v425
    %v436 = vmul.f32 %v374, %v427
    %v437 = vmul.f32 %v379, %v429
    %v438 = vadd.f32 %v62, %v430
    %v439 = vadd.f32 %v63, %v431
    %v440 = vadd.f32 %v64, %v432
    %v441 = vadd.f32 %v65, %v433
    %v442 = vadd.f32 %v66, %v434
    %v443 = vadd.f32 %v67, %v435
    %v444 = vadd.f32 %v68, %v436
    %v445 = vadd.f32 %v69, %v437
    %446 = vst [vmem:[#allocation8] sm:$0xff] %v438
    %447 = vst [vmem:[#allocation8 + $0x8] sm:$0xff] %v439
    %448 = vst [vmem:[#allocation8 + $0x10] sm:$0xff] %v440
    %449 = vst [vmem:[#allocation8 + $0x18] sm:$0xff] %v441
    %450 = vst [vmem:[#allocation8 + $0x20] sm:$0xff] %v442
    %451 = vst [vmem:[#allocation8 + $0x28] sm:$0xff] %v443
    %452 = vst [vmem:[#allocation8 + $0x30] sm:$0xff] %v444
    %453 = vst [vmem:[#allocation8 + $0x38] sm:$0xff] %v445
    // Predicated region
    $region34: #{tpu_custom_call.1} parent=1 // pred_check
      _
    $region35: #{tpu_custom_call.1} parent=1 // pred_check_branch
      %455 = sbr.rel (0) target = $region37
    $region36: #{tpu_custom_call.1} parent=1 // pred_region
      %s457 = ssub.s32 1024, 1024
      %458 = vsyncadd [#allocation4], %s457
      %s459 = sshll.u32 [#allocation8], 4
      %s460 = int_to_ptr.vmem [resolvable:$true] %s459
      %465 = dma.vmem_to_hbm [thread:$0]  %s460, 1024, %s5, [#allocation4], 128, 128, 8
    $region37: #{tpu_custom_call.1} parent=1 // pred_fallthru
      _
    // Predicated region
    $region38: #{tpu_custom_call.1} parent=1 // pred_check
      _
    $region39: #{tpu_custom_call.1} parent=1 // pred_check_branch
      %467 = sbr.rel (0) target = $region41
    $region40: #{tpu_custom_call.1} parent=1 // pred_region
      %468 = dma.done [#allocation4], 1024
    $region41: #{tpu_custom_call.1} parent=1 // pred_fallthru
      _
    %469 = vsyncpa [#allocation3], 1
    %470 = vsyncpa [#allocation6], 1
    %471 = vsyncpa [#allocation4], 1

</llo_original>
